<compile_context>
chip_gen: v6e
topology: v6e:2x2x1
jax: 0.10.0
libtpu: 0.0.40
codegen_flags: <defaults>
</compile_context>

<pallas_src>
import functools
import math

import numpy as np
import jax
import jax.numpy as jnp
from jax import lax
from jax.experimental import pallas as pl
from jax.experimental.pallas import tpu as pltpu

_GAUSS_1D = np.array([0.05, 0.25, 0.4, 0.25, 0.05], dtype=np.float64)


def _replicate_conv_matrix(n: int) -> np.ndarray:
    """Band matrix M with (M @ v)[i] = sum_t k[t] * v[clamp(i + t - 2, 0, n-1)].

    Encodes 1-D cross-correlation with the 5-tap Gaussian under replicate
    padding, exactly matching F.pad(mode='replicate') + F.conv2d.
    """
    M = np.zeros((n, n), dtype=np.float64)
    for i in range(n):
        for t in range(5):
            j = min(max(i + t - 2, 0), n - 1)
            M[i, j] += _GAUSS_1D[t]
    return M


def _composite_matrices_np(H: int, W: int):
    """A2 (HxH), Bt2 (WxW) such that conv(mask4(conv(d))) == A2 @ d @ Bt2."""
    A = _replicate_conv_matrix(H)            # row conv:  conv(d) = A @ d @ B^T
    Bt = _replicate_conv_matrix(W).T         # col conv (pre-transposed)
    Dh = np.diag((np.arange(H) % 2 == 0).astype(np.float64))
    Dw = np.diag((np.arange(W) % 2 == 0).astype(np.float64))
    A2 = 4.0 * (A @ Dh @ A)                  # 4x even-row mask folded in
    Bt2 = Bt @ Dw @ Bt                       # even-col mask folded in
    return A2, Bt2


def _vmem_capacity_bytes() -> int:
    try:
        cap = getattr(pltpu.get_tpu_info(), "vmem_capacity_bytes", None)
        if cap:
            return int(cap)
    except Exception:
        pass
    return 64 * 1024 * 1024                  # conservative (v7x per-core size)


def _num_tensorcores() -> int:
    try:
        info = pltpu.get_tpu_info()
        for name in ("num_cores", "num_tensorcores", "tensorcore_count", "core_count"):
            v = getattr(info, name, None)
            if isinstance(v, int) and v > 0:
                return v
    except Exception:
        pass
    return 1


def _edge_loss_kernel(x_ref, y_ref, rowm_ref, bt2k_ref, o_ref, *, bb, H, row_bd):
    # x_ref / y_ref: (bb*H, Wp) slab of bb lane-groups (k planes packed per group),
    # in their native dtype.  rowm_ref: block-diag kron(I_bb, A2) (row_bd mode) or
    # plain A2 (loop mode).  bt2k_ref: (Wp, Wp) block-diag col-conv matrix.
    # laplacian is linear -> operate on d = x - y once; upcast to f32 in-kernel.
    d = x_ref[...].astype(jnp.float32) - y_ref[...].astype(jnp.float32)

    # Composite column conv for every plane in the block: one MXU matmul.
    t = jnp.dot(d, bt2k_ref[...], preferred_element_type=jnp.float32)

    if row_bd:
        # Composite row conv for all groups as a single block-diagonal matmul
        # (fills the MXU contraction dim, no sublane-slicing relayouts).
        f2 = jnp.dot(rowm_ref[...], t, preferred_element_type=jnp.float32)
        diff = d - f2                        # == laplacian(x) - laplacian(y)
        s = jnp.sum(diff * diff)
    else:
        a2 = rowm_ref[...]
        s = jnp.float32(0.0)
        for p in range(bb):                  # static unroll, bb <= 8
            rows = slice(p * H, (p + 1) * H)
            f2 = jnp.dot(a2, t[rows, :], preferred_element_type=jnp.float32)
            diff = d[rows, :] - f2
            s = s + jnp.sum(diff * diff)

    o_ref[...] = jnp.reshape(s, (1, 1, 1))   # per-block partial sum


def edge_loss(x, y, loss_weight=1.0):
    N, C, H, W = x.shape
    assert C == 3, "EdgeLoss is defined for 3-channel inputs (kernel.repeat(3,...))"
    assert y.shape == x.shape
    NC = N * C

    # ---- layout: lane-pack k planes along the 128-lane axis when W < 128 ----
    k = min(max(1, 128 // W), NC) if W < 128 else 1
    Wp = k * W
    NCk = -(-NC // k)                        # number of lane-groups
    in_itemsize = max(jnp.dtype(x.dtype).itemsize, jnp.dtype(y.dtype).itemsize)

    # ---- generation-aware VMEM sizing ----
    vmem_cap = _vmem_capacity_bytes()
    budget = vmem_cap * 5 // 8               # working-set target
    vmem_limit = vmem_cap * 3 // 4           # scoped limit handed to Mosaic

    def vmem_fit(bb):
        """(fits, row_bd, est_bytes) for a candidate lane-group batch bb."""
        io = 2 * 2 * bb * H * Wp * in_itemsize       # x,y blocks, double-buffered
        tmp = 4 * bb * H * Wp * 4                    # d, t, f2, diff (f32)
        base = io + tmp + Wp * Wp * 4                # + Bt2k (single-buffered)
        bd = (bb * H) * (bb * H) * 4                 # block-diag row matrix
        if bb * H <= 1024 and base + bd <= budget:
            return True, True, base + bd
        return (base + H * H * 4 <= budget), False, base + H * H * 4

    def valid(bb):                                   # (8,128) sublane rule
        return bb == NCk or (bb * H) % 8 == 0

    candidates = [b for b in range(min(8, NCk), 0, -1) if valid(b)]
    bb = candidates[-1]                              # smallest valid (fallback)
    for b in candidates:                             # largest bb that fits budget
        if vmem_fit(b)[0]:
            bb = b
            break
    # v7x: prefer an even grid count G so both TensorCores get balanced work.
    if NCk >= 2 and _num_tensorcores() >= 2:
        for b in range(bb, 0, -1):
            if not valid(b) or 2 * b < bb:
                continue
            g2 = -(-NCk // b)
            if g2 >= 2 and g2 % 2 == 0 and vmem_fit(b)[0]:
                bb = b
                break
    row_bd = vmem_fit(bb)[1]
    G = -(-NCk // bb)

    # ---- host-precomputed composite matrices (f32) ----
    A2_np, Bt2_np = _composite_matrices_np(H, W)
    bt2k = jnp.asarray(np.kron(np.eye(k), Bt2_np), jnp.float32)
    rowm_np = np.kron(np.eye(bb), A2_np) if row_bd else A2_np
    rowm = jnp.asarray(rowm_np, jnp.float32)

    # ---- lane-packed, row-stacked slab (native dtype; zero planes -> 0 loss) ----
    def to_slab(a):
        a = a.reshape(NC, H, W)
        pad_planes = NCk * k - NC
        if pad_planes:
            a = jnp.pad(a, ((0, pad_planes), (0, 0), (0, 0)))
        a = jnp.transpose(a.reshape(NCk, k, H, W), (0, 2, 1, 3)).reshape(NCk * H, Wp)
        pad_groups = G * bb - NCk
        if pad_groups:
            a = jnp.pad(a, ((0, pad_groups * H), (0, 0)))
        return a

    xs = to_slab(x)
    ys = to_slab(y)

    kernel = functools.partial(_edge_loss_kernel, bb=bb, H=H, row_bd=row_bd)

    row_flops = 2 * (bb * H) * (bb * H) * Wp if row_bd else bb * 2 * H * H * Wp
    flops = G * (2 * (bb * H) * Wp * Wp + row_flops + 4 * bb * H * Wp)
    bytes_accessed = (2 * G * bb * H * Wp * in_itemsize
                      + (rowm.size + bt2k.size) * 4 + G * 4)

    def const_spec(shape, single_buffer):
        index_map = lambda i: (0,) * len(shape)
        if single_buffer:
            try:  # grid-invariant operand: one VMEM buffer is enough
                return pl.BlockSpec(shape, index_map, pipeline_mode=pl.Buffered(1))
            except Exception:
                pass
        return pl.BlockSpec(shape, index_map)

    def run(single_buffer_consts):
        grid_spec = pltpu.PrefetchScalarGridSpec(
            num_scalar_prefetch=0,
            grid=(G,),
            in_specs=[
                pl.BlockSpec((bb * H, Wp), lambda i: (i, 0)),
                pl.BlockSpec((bb * H, Wp), lambda i: (i, 0)),
                const_spec(tuple(rowm.shape), single_buffer_consts),
                const_spec(tuple(bt2k.shape), single_buffer_consts),
            ],
            out_specs=pl.BlockSpec((1, 1, 1), lambda i: (i, 0, 0)),
        )
        return pl.pallas_call(
            kernel,
            out_shape=jax.ShapeDtypeStruct((G, 1, 1), jnp.float32),
            grid_spec=grid_spec,
            compiler_params=pltpu.CompilerParams(
                dimension_semantics=("parallel",),
                vmem_limit_bytes=int(vmem_limit)),
            cost_estimate=pl.CostEstimate(
                flops=int(flops), transcendentals=0,
                bytes_accessed=int(bytes_accessed)),
        )(xs, ys, rowm, bt2k)

    try:
        partials = run(True)
    except Exception:
        # pl.Buffered(1) not supported by this jax/Mosaic -> default buffering.
        partials = run(False)

    mse = jnp.sum(partials) / (N * C * H * W)        # padded planes contribute 0
    return mse * jnp.float32(loss_weight)


# ---------------- pure-JAX reference (for correctness check only) -----------
def _conv_gauss_ref(img):
    k1 = jnp.asarray(_GAUSS_1D, jnp.float32)
    k2 = jnp.outer(k1, k1)
    C = img.shape[1]
    kern = jnp.broadcast_to(k2, (C, 1, 5, 5))
    pad = jnp.pad(img, ((0, 0), (0, 0), (2, 2), (2, 2)), mode="edge")
    return lax.conv_general_dilated(
        pad, kern, window_strides=(1, 1), padding="VALID",
        dimension_numbers=("NCHW", "OIHW", "NCHW"), feature_group_count=C)


def _laplacian_ref(cur):
    f1 = _conv_gauss_ref(cur)
    new_f = jnp.zeros_like(f1)
    new_f = new_f.at[:, :, ::2, ::2].set(f1[:, :, ::2, ::2] * 4.0)
    f2 = _conv_gauss_ref(new_f)
    return cur - f2


def _edge_loss_ref(x, y, loss_weight=1.0):
    d = _laplacian_ref(x) - _laplacian_ref(y)
    return jnp.mean(d * d) * loss_weight


if __name__ == "__main__":
    key = jax.random.PRNGKey(0)
    kx, ky = jax.random.split(key)
    x = jax.random.normal(kx, (2, 3, 16, 16), dtype=jnp.float32)
    y = jax.random.normal(ky, (2, 3, 16, 16), dtype=jnp.float32)

    ref = jax.block_until_ready(_edge_loss_ref(x, y, 1.0))

    # f32 path (exact vs. reference).
    out = jax.block_until_ready(edge_loss(x, y, loss_weight=1.0))
    np.testing.assert_allclose(np.asarray(out), np.asarray(ref),
                               rtol=1e-3, atol=1e-5)

    # bf16 path: inputs stay bf16 end-to-end (no wrapper upcast); loose check.
    xb, yb = x.astype(jnp.bfloat16), y.astype(jnp.bfloat16)
    out_b = jax.block_until_ready(edge_loss(xb, yb, loss_weight=1.0))
    np.testing.assert_allclose(np.asarray(out_b), np.asarray(ref),
                               rtol=5e-2, atol=1e-3)

    print("KERNEL_OK")
</pallas_src>

<mosaic_0001>
module attributes {stable_mosaic.version = 11 : i64} {
  func.func @_edge_loss_kernel(%arg0: i32, %arg1: memref<16x96xf32, #tpu.memory_space<vmem>>, %arg2: memref<16x96xf32, #tpu.memory_space<vmem>>, %arg3: memref<16x16xf32, #tpu.memory_space<vmem>>, %arg4: memref<96x96xf32, #tpu.memory_space<vmem>>, %arg5: memref<1x1x1xf32, #tpu.memory_space<vmem>>) attributes {dimension_semantics = [#tpu.dimension_semantics<parallel>], iteration_bounds = array<i64: 1>, scalar_prefetch = 0 : i64, scratch_operands = 0 : i64, tpu.core_type = #tpu.core_type<tc>, window_params = [{transform_indices = @transform_0, window_bounds = array<i64: 16, 96>}, {transform_indices = @transform_1, window_bounds = array<i64: 16, 96>}, {pipeline_mode = #tpu.pipeline_mode<synchronous>, transform_indices = @transform_2, window_bounds = array<i64: 16, 16>}, {pipeline_mode = #tpu.pipeline_mode<synchronous>, transform_indices = @transform_3, window_bounds = array<i64: 96, 96>}, {transform_indices = @transform_4, window_bounds = array<i64: 1, 1, 1>}]} {
    %c0 = arith.constant 0 : index
    %c0_0 = arith.constant 0 : index
    %0 = vector.load %arg1[%c0, %c0_0] : memref<16x96xf32, #tpu.memory_space<vmem>>, vector<16x96xf32>
    %c0_1 = arith.constant 0 : index
    %c0_2 = arith.constant 0 : index
    %1 = vector.load %arg2[%c0_1, %c0_2] : memref<16x96xf32, #tpu.memory_space<vmem>>, vector<16x96xf32>
    %2 = arith.subf %0, %1 : vector<16x96xf32>
    %c0_3 = arith.constant 0 : index
    %c0_4 = arith.constant 0 : index
    %3 = vector.load %arg4[%c0_3, %c0_4] : memref<96x96xf32, #tpu.memory_space<vmem>>, vector<96x96xf32>
    %cst = arith.constant dense<0.000000e+00> : vector<16x96xf32>
    %4 = tpu.matmul %2, %3, %cst {dimension_numbers = #tpu.dot_dimension_numbers<[1], [0], [0], [1], [0, 0, 1, 1], [], []>} : vector<16x96xf32>, vector<96x96xf32>, vector<16x96xf32> -> vector<16x96xf32>
    %c0_5 = arith.constant 0 : index
    %c0_6 = arith.constant 0 : index
    %5 = vector.load %arg3[%c0_5, %c0_6] : memref<16x16xf32, #tpu.memory_space<vmem>>, vector<16x16xf32>
    %cst_7 = arith.constant dense<0.000000e+00> : vector<16x96xf32>
    %6 = tpu.matmul %5, %4, %cst_7 {dimension_numbers = #tpu.dot_dimension_numbers<[1], [0], [0], [1], [0, 0, 1, 1], [], []>} : vector<16x16xf32>, vector<16x96xf32>, vector<16x96xf32> -> vector<16x96xf32>
    %7 = arith.subf %2, %6 : vector<16x96xf32>
    %8 = arith.mulf %7, %7 : vector<16x96xf32>
    %9 = vector.shape_cast %8 : vector<16x96xf32> to vector<1x16x96xf32>
    %cst_8 = arith.constant dense<0.000000e+00> : vector<1xf32>
    %10 = vector.multi_reduction <add>, %9, %cst_8 [1, 2] : vector<1x16x96xf32> to vector<1xf32>
    %11 = vector.shape_cast %10 : vector<1xf32> to vector<1x1x1xf32>
    %12 = vector.extract %11[0, 0, 0] : f32 from vector<1x1x1xf32>
    %13 = vector.broadcast %12 : f32 to vector<1x1x1xf32>
    %c0_9 = arith.constant 0 : index
    %c0_10 = arith.constant 0 : index
    %c0_11 = arith.constant 0 : index
    %14 = vector.load %arg5[%c0_9, %c0_10, %c0_11] : memref<1x1x1xf32, #tpu.memory_space<vmem>>, vector<1x1x1xf32>
    tpu.vector_store %arg5[%c0_9, %c0_10, %c0_11], %13 {strides = array<i32>} : memref<1x1x1xf32, #tpu.memory_space<vmem>>, vector<1x1x1xf32>,
    return
  }
  func.func @transform_0(%arg0: i32) -> (i32, i32) {
    %c0_i32 = arith.constant 0 : i32
    %c0_i32_0 = arith.constant 0 : i32
    return %arg0, %c0_i32 : i32, i32
  }
  func.func @transform_1(%arg0: i32) -> (i32, i32) {
    %c0_i32 = arith.constant 0 : i32
    %c0_i32_0 = arith.constant 0 : i32
    return %arg0, %c0_i32 : i32, i32
  }
  func.func @transform_2(%arg0: i32) -> (i32, i32) {
    %c0_i32 = arith.constant 0 : i32
    %c0_i32_0 = arith.constant 0 : i32
    %c0_i32_1 = arith.constant 0 : i32
    return %c0_i32, %c0_i32_0 : i32, i32
  }
  func.func @transform_3(%arg0: i32) -> (i32, i32) {
    %c0_i32 = arith.constant 0 : i32
    %c0_i32_0 = arith.constant 0 : i32
    %c0_i32_1 = arith.constant 0 : i32
    return %c0_i32, %c0_i32_0 : i32, i32
  }
  func.func @transform_4(%arg0: i32) -> (i32, i32, i32) {
    %c0_i32 = arith.constant 0 : i32
    %c0_i32_0 = arith.constant 0 : i32
    %c0_i32_1 = arith.constant 0 : i32
    return %arg0, %c0_i32, %c0_i32_0 : i32, i32, i32
  }
}

module attributes {stable_mosaic.version = 11 : i64} {
  func.func @_edge_loss_kernel(%arg0: i32, %arg1: memref<16x96xf32, #tpu.memory_space<vmem>>, %arg2: memref<16x96xf32, #tpu.memory_space<vmem>>, %arg3: memref<16x16xf32, #tpu.memory_space<vmem>>, %arg4: memref<96x96xf32, #tpu.memory_space<vmem>>, %arg5: memref<1x1x1xf32, #tpu.memory_space<vmem>>) attributes {dimension_semantics = [#tpu.dimension_semantics<parallel>], iteration_bounds = array<i64: 1>, scalar_prefetch = 0 : i64, scratch_operands = 0 : i64, tpu.core_type = #tpu.core_type<tc>, window_params = [{transform_indices = @transform_0, window_bounds = array<i64: 16, 96>}, {transform_indices = @transform_1, window_bounds = array<i64: 16, 96>}, {pipeline_mode = #tpu.pipeline_mode<synchronous>, transform_indices = @transform_2, window_bounds = array<i64: 16, 16>}, {pipeline_mode = #tpu.pipeline_mode<synchronous>, transform_indices = @transform_3, window_bounds = array<i64: 96, 96>}, {transform_indices = @transform_4, window_bounds = array<i64: 1, 1, 1>}]} {
    %c0 = arith.constant 0 : index
    %c0_0 = arith.constant 0 : index
    %0 = vector.load %arg1[%c0, %c0_0] : memref<16x96xf32, #tpu.memory_space<vmem>>, vector<16x96xf32>
    %c0_1 = arith.constant 0 : index
    %c0_2 = arith.constant 0 : index
    %1 = vector.load %arg2[%c0_1, %c0_2] : memref<16x96xf32, #tpu.memory_space<vmem>>, vector<16x96xf32>
    %2 = arith.subf %0, %1 : vector<16x96xf32>
    %c0_3 = arith.constant 0 : index
    %c0_4 = arith.constant 0 : index
    %3 = vector.load %arg4[%c0_3, %c0_4] : memref<96x96xf32, #tpu.memory_space<vmem>>, vector<96x96xf32>
    %cst = arith.constant dense<0.000000e+00> : vector<16x96xf32>
    %4 = tpu.matmul %2, %3, %cst {dimension_numbers = #tpu.dot_dimension_numbers<[1], [0], [0], [1], [0, 0, 1, 1], [], []>} : vector<16x96xf32>, vector<96x96xf32>, vector<16x96xf32> -> vector<16x96xf32>
    %c0_5 = arith.constant 0 : index
    %c0_6 = arith.constant 0 : index
    %5 = vector.load %arg3[%c0_5, %c0_6] : memref<16x16xf32, #tpu.memory_space<vmem>>, vector<16x16xf32>
    %cst_7 = arith.constant dense<0.000000e+00> : vector<16x96xf32>
    %6 = tpu.matmul %5, %4, %cst_7 {dimension_numbers = #tpu.dot_dimension_numbers<[1], [0], [0], [1], [0, 0, 1, 1], [], []>} : vector<16x16xf32>, vector<16x96xf32>, vector<16x96xf32> -> vector<16x96xf32>
    %7 = arith.subf %2, %6 : vector<16x96xf32>
    %8 = arith.mulf %7, %7 : vector<16x96xf32>
    %9 = vector.shape_cast %8 : vector<16x96xf32> to vector<1x16x96xf32>
    %cst_8 = arith.constant dense<0.000000e+00> : vector<1xf32>
    %10 = vector.multi_reduction <add>, %9, %cst_8 [1, 2] : vector<1x16x96xf32> to vector<1xf32>
    %11 = vector.shape_cast %10 : vector<1xf32> to vector<1x1x1xf32>
    %12 = vector.extract %11[0, 0, 0] : f32 from vector<1x1x1xf32>
    %13 = vector.broadcast %12 : f32 to vector<1x1x1xf32>
    %c0_9 = arith.constant 0 : index
    %c0_10 = arith.constant 0 : index
    %c0_11 = arith.constant 0 : index
    %14 = vector.load %arg5[%c0_9, %c0_10, %c0_11] : memref<1x1x1xf32, #tpu.memory_space<vmem>>, vector<1x1x1xf32>
    tpu.vector_store %arg5[%c0_9, %c0_10, %c0_11], %13 {strides = array<i32>} : memref<1x1x1xf32, #tpu.memory_space<vmem>>, vector<1x1x1xf32>,
    return
  }
  func.func @transform_0(%arg0: i32) -> (i32, i32) {
    %c0_i32 = arith.constant 0 : i32
    %c0_i32_0 = arith.constant 0 : i32
    return %arg0, %c0_i32 : i32, i32
  }
  func.func @transform_1(%arg0: i32) -> (i32, i32) {
    %c0_i32 = arith.constant 0 : i32
    %c0_i32_0 = arith.constant 0 : i32
    return %arg0, %c0_i32 : i32, i32
  }
  func.func @transform_2(%arg0: i32) -> (i32, i32) {
    %c0_i32 = arith.constant 0 : i32
    %c0_i32_0 = arith.constant 0 : i32
    %c0_i32_1 = arith.constant 0 : i32
    return %c0_i32, %c0_i32_0 : i32, i32
  }
  func.func @transform_3(%arg0: i32) -> (i32, i32) {
    %c0_i32 = arith.constant 0 : i32
    %c0_i32_0 = arith.constant 0 : i32
    %c0_i32_1 = arith.constant 0 : i32
    return %c0_i32, %c0_i32_0 : i32, i32
  }
  func.func @transform_4(%arg0: i32) -> (i32, i32, i32) {
    %c0_i32 = arith.constant 0 : i32
    %c0_i32_0 = arith.constant 0 : i32
    %c0_i32_1 = arith.constant 0 : i32
    return %arg0, %c0_i32, %c0_i32_0 : i32, i32, i32
  }
}

</mosaic_0001>

<llo_original>
// kernel: tpu_custom_call.1
$region0: #{tpu_custom_call.1}
  #allocation0 [shape = 'u32[]', space=smem, size = 0x4, offset = 0x4, fixed_abs, tag = 'smem constant byte address 0x4 - core index']
  #allocation1 [shape = 'u32[144,128]{1,0:T(1,128)}', space=vmem, size = 0x12000, scoped, tag = 'internal scratch']
  %s0 = inlined_call_operand.hbm [shape: f32[16,96], index: 0, kind: input, shape index: {}]
  %s1 = inlined_call_operand.hbm [shape: f32[16,96], index: 1, kind: input, shape index: {}]
  %s2 = inlined_call_operand.hbm [shape: f32[16,16], index: 2, kind: input, shape index: {}]
  %s3 = inlined_call_operand.hbm [shape: f32[96,96], index: 3, kind: input, shape index: {}]
  %s4 = inlined_call_operand.hbm [shape: f32[1,1,1], index: 4, kind: output, shape index: {}]
  %s5 = sld [smem:[#allocation0]]
  $region42: #{tpu_custom_call.1} parent=0
    _
  %s7 = ssub.s32 1, %s5
  %s8 = scalar_select 0, %s7, %s5
  $region1: #{tpu_custom_call.1} parent=0
    #allocation2 [shape = 'u8[8192]{0}', space=vmem, size = 0x2000, scoped, tag = 'input window, operand 0, single buffered']
    #allocation3 [shape = 's32[1]{0}', space=sflag, size = 0x4, scoped, tag = 'scoped memory for tpu_custom_call.1']
    #allocation4 [shape = 's32[1]{0}', space=sflag, size = 0x4, scoped, tag = 'scoped memory for tpu_custom_call.1']
    #allocation5 [shape = 'u8[8192]{0}', space=vmem, size = 0x2000, scoped, tag = 'input window, operand 1, single buffered']
    #allocation6 [shape = 's32[1]{0}', space=sflag, size = 0x4, scoped, tag = 'scoped memory for tpu_custom_call.1']
    #allocation7 [shape = 'u8[8192]{0}', space=vmem, size = 0x2000, scoped, tag = 'input window, operand 2, single buffered']
    #allocation8 [shape = 'u8[49152]{0}', space=vmem, size = 0xc000, scoped, tag = 'input window, operand 3, single buffered']
    #allocation9 [shape = 's32[1]{0}', space=sflag, size = 0x4, scoped, tag = 'scoped memory for tpu_custom_call.1']
    #allocation10 [shape = 'u8[512]{0}', space=vmem, size = 0x400, scoped, tag = 'output window, operand 0, single buffered']
    %9 = vsyncpa [#allocation3], 0
    %10 = vsyncpa [#allocation6], 0
    %11 = vsyncpa [#allocation9], 0
    %12 = vsyncpa [#allocation4], 0
    // Predicated region
    $region2: #{tpu_custom_call.1} parent=1 // pred_check
      _
    $region3: #{tpu_custom_call.1} parent=1 // pred_check_branch
      %14 = sbr.rel (0) target = $region5
    $region4: #{tpu_custom_call.1} parent=1 // pred_region
      %s16 = ssub.s32 256, 256
      %17 = vsyncadd [#allocation3], %s16
      %s18 = sshll.u32 [#allocation2], 4
      %s19 = int_to_ptr.vmem [resolvable:$true] %s18
      %24 = dma.hbm_to_vmem [thread:$0]  %s0, 256, %s19, [#allocation3], 128, 128, 8
    $region5: #{tpu_custom_call.1} parent=1 // pred_fallthru
      _
    // Predicated region
    $region6: #{tpu_custom_call.1} parent=1 // pred_check
      _
    $region7: #{tpu_custom_call.1} parent=1 // pred_check_branch
      %26 = sbr.rel (0) target = $region9
    $region8: #{tpu_custom_call.1} parent=1 // pred_region
      %s28 = ssub.s32 256, 256
      %29 = vsyncadd [#allocation6], %s28
      %s30 = sshll.u32 [#allocation5], 4
      %s31 = int_to_ptr.vmem [resolvable:$true] %s30
      %36 = dma.hbm_to_vmem [thread:$0]  %s1, 256, %s31, [#allocation6], 128, 128, 8
    $region9: #{tpu_custom_call.1} parent=1 // pred_fallthru
      _
    // Predicated region
    $region10: #{tpu_custom_call.1} parent=1 // pred_check
      _
    $region11: #{tpu_custom_call.1} parent=1 // pred_check_branch
      %38 = sbr.rel (0) target = $region13
    $region12: #{tpu_custom_call.1} parent=1 // pred_region
      %s40 = ssub.s32 256, 256
      %41 = vsyncadd [#allocation6], %s40
      %s42 = sshll.u32 [#allocation7], 4
      %s43 = int_to_ptr.vmem [resolvable:$true] %s42
      %48 = dma.hbm_to_vmem [thread:$0]  %s2, 256, %s43, [#allocation6], 128, 128, 8
    $region13: #{tpu_custom_call.1} parent=1 // pred_fallthru
      _
    // Predicated region
    $region14: #{tpu_custom_call.1} parent=1 // pred_check
      _
    $region15: #{tpu_custom_call.1} parent=1 // pred_check_branch
      %50 = sbr.rel (0) target = $region17
    $region16: #{tpu_custom_call.1} parent=1 // pred_region
      %s52 = ssub.s32 1536, 1536
      %53 = vsyncadd [#allocation9], %s52
      %s54 = sshll.u32 [#allocation8], 4
      %s55 = int_to_ptr.vmem [resolvable:$true] %s54
      %60 = dma.hbm_to_vmem [thread:$0]  %s3, 1536, %s55, [#allocation9], 128, 128, 8
    $region17: #{tpu_custom_call.1} parent=1 // pred_fallthru
      _
    // Predicated region
    $region18: #{tpu_custom_call.1} parent=1 // pred_check
      _
    $region19: #{tpu_custom_call.1} parent=1 // pred_check_branch
      %62 = sbr.rel (0) target = $region21
    $region20: #{tpu_custom_call.1} parent=1 // pred_region
      %63 = dma.done [#allocation3], 256
    $region21: #{tpu_custom_call.1} parent=1 // pred_fallthru
      _
    // Predicated region
    $region22: #{tpu_custom_call.1} parent=1 // pred_check
      _
    $region23: #{tpu_custom_call.1} parent=1 // pred_check_branch
      %65 = sbr.rel (0) target = $region25
    $region24: #{tpu_custom_call.1} parent=1 // pred_region
      %66 = dma.done [#allocation6], 256
    $region25: #{tpu_custom_call.1} parent=1 // pred_fallthru
      _
    // Predicated region
    $region26: #{tpu_custom_call.1} parent=1 // pred_check
      _
    $region27: #{tpu_custom_call.1} parent=1 // pred_check_branch
      %68 = sbr.rel (0) target = $region29
    $region28: #{tpu_custom_call.1} parent=1 // pred_region
      %69 = dma.done [#allocation6], 256
    $region29: #{tpu_custom_call.1} parent=1 // pred_fallthru
      _
    // Predicated region
    $region30: #{tpu_custom_call.1} parent=1 // pred_check
      _
    $region31: #{tpu_custom_call.1} parent=1 // pred_check_branch
      %71 = sbr.rel (0) target = $region33
    $region32: #{tpu_custom_call.1} parent=1 // pred_region
      %72 = dma.done [#allocation9], 1536
    $region33: #{tpu_custom_call.1} parent=1 // pred_fallthru
      _
    %v73 = vld [vmem:[#allocation2] sm:$0xff]
    %v74 = vld [vmem:[#allocation2 + $0x8] sm:$0xff]
    %v75 = vld [vmem:[#allocation5] sm:$0xff]
    %v76 = vld [vmem:[#allocation5 + $0x8] sm:$0xff]
    %v77 = vsub.f32 %v73, %v75
    %v78 = vsub.f32 %v74, %v76
    %v79 = vld [vmem:[#allocation8] sm:$0xff]
    %v80 = vld [vmem:[#allocation8 + $0x8] sm:$0xff]
    %v81 = vld [vmem:[#allocation8 + $0x10] sm:$0xff]
    %v82 = vld [vmem:[#allocation8 + $0x18] sm:$0xff]
    %v83 = vld [vmem:[#allocation8 + $0x20] sm:$0xff]
    %v84 = vld [vmem:[#allocation8 + $0x28] sm:$0xff]
    %v85 = vld [vmem:[#allocation8 + $0x30] sm:$0xff]
    %v86 = vld [vmem:[#allocation8 + $0x38] sm:$0xff]
    %v87 = vld [vmem:[#allocation8 + $0x40] sm:$0xff]
    %v88 = vld [vmem:[#allocation8 + $0x48] sm:$0xff]
    %v89 = vld [vmem:[#allocation8 + $0x50] sm:$0xff]
    %v90 = vld [vmem:[#allocation8 + $0x58] sm:$0xff]
    %vm91 = vcmask 785408
    %v93 = vsel %vm91, %v77, 0
    %v96 = vsel %vm91, %v78, 0
    %98 = vmatprep.subr.mxu0 0.0
    %99 = vmatpush1.msra.mxu0 0.0
    %100 = vmatprep.subr.mxu0 0.0
    %101 = vmatpush1.msra.mxu0 0.0
    %102 = vmatprep.subr.mxu0 0.0
    %103 = vmatpush1.msra.mxu0 0.0
    %104 = vmatprep.subr.mxu0 0.0
    %105 = vmatpush1.msra.mxu0 0.0
    %106 = vmatprep.subr.mxu0 0.0
    %107 = vmatpush1.msra.mxu0 %v90
    %108 = vmatprep.subr.mxu0 0.0
    %109 = vmatpush1.msra.mxu0 %v89
    %110 = vmatprep.subr.mxu0 0.0
    %111 = vmatpush1.msra.mxu0 %v88
    %112 = vmatprep.subr.mxu0 0.0
    %113 = vmatpush1.msra.mxu0 %v87
    %114 = vmatprep.subr.mxu0 0.0
    %115 = vmatpush1.msra.mxu0 %v86
    %116 = vmatprep.subr.mxu0 0.0
    %117 = vmatpush1.msra.mxu0 %v85
    %118 = vmatprep.subr.mxu0 0.0
    %119 = vmatpush1.msra.mxu0 %v84
    %120 = vmatprep.subr.mxu0 0.0
    %121 = vmatpush1.msra.mxu0 %v83
    %122 = vmatprep.subr.mxu0 0.0
    %123 = vmatpush1.msra.mxu0 %v82
    %124 = vmatprep.subr.mxu0 0.0
    %125 = vmatpush1.msra.mxu0 %v81
    %126 = vmatprep.subr.mxu0 0.0
    %127 = vmatpush1.msra.mxu0 %v80
    %128 = vmatprep.subr.mxu0 0.0
    %129 = vmatpush1.msra.mxu0 %v79
    %130 = vmatprep.subr.mxu0 0.0
    %131 = vmatpush2.msra.mxu0 0.0
    %132 = vmatprep.subr.mxu0 0.0
    %133 = vmatpush2.msra.mxu0 0.0
    %134 = vmatprep.subr.mxu0 0.0
    %135 = vmatpush2.msra.mxu0 0.0
    %136 = vmatprep.subr.mxu0 0.0
    %137 = vmatpush2.msra.mxu0 0.0
    %138 = vmatprep.subr.mxu0 0.0
    %139 = vmatpush2.msra.mxu0 0.0
    %140 = vmatprep.subr.mxu0 0.0
    %141 = vmatpush2.msra.mxu0 0.0
    %142 = vmatprep.subr.mxu0 0.0
    %143 = vmatpush2.msra.mxu0 0.0
    %144 = vmatprep.subr.mxu0 0.0
    %145 = vmatpush2.msra.mxu0 0.0
    %146 = vmatprep.subr.mxu0 0.0
    %147 = vmatpush2.msra.mxu0 0.0
    %148 = vmatprep.subr.mxu0 0.0
    %149 = vmatpush2.msra.mxu0 0.0
    %150 = vmatprep.subr.mxu0 0.0
    %151 = vmatpush2.msra.mxu0 0.0
    %152 = vmatprep.subr.mxu0 0.0
    %153 = vmatpush2.msra.mxu0 0.0
    %154 = vmatprep.subr.mxu0 0.0
    %155 = vmatpush2.msra.mxu0 0.0
    %156 = vmatprep.subr.mxu0 0.0
    %157 = vmatpush2.msra.mxu0 0.0
    %158 = vmatprep.subr.mxu0 0.0
    %159 = vmatpush2.msra.mxu0 0.0
    %160 = vmatprep.subr.mxu0 0.0
    %161 = vmatpush2.msra.mxu0 0.0
    %162 = vmatprep.mubr.f32.mxu0 0.0
    %163 = vmatmul.mubr.f32.gmra.mxu0 %v93
    %v164 = vpop.f32.mrf.mxu0
    %v165 = vadd.f32 0.0, %v164
    %v166 = vpop.f32.mrf.mxu0
    %167 = vmatprep.mubr.f32.mxu0 0.0
    %168 = vmatmul.mubr.f32.gmra.mxu0 %v96
    %v169 = vpop.f32.mrf.mxu0
    %v170 = vadd.f32 0.0, %v169
    %v171 = vpop.f32.mrf.mxu0
    %172 = vdwg.mxu0
    %v173 = vld [vmem:[#allocation7] sm:$0xff]
    %v174 = vld [vmem:[#allocation7 + $0x8] sm:$0xff]
    %vm175 = vcmask 130048
    %v177 = vsel %vm175, %v173, 0
    %v180 = vsel %vm175, %v174, 0
    %182 = vmatprep.subr.mxu0 0.0
    %183 = vmatpush1.msra.mxu0 0.0
    %184 = vmatprep.subr.mxu0 0.0
    %185 = vmatpush1.msra.mxu0 0.0
    %186 = vmatprep.subr.mxu0 0.0
    %187 = vmatpush1.msra.mxu0 0.0
    %188 = vmatprep.subr.mxu0 0.0
    %189 = vmatpush1.msra.mxu0 0.0
    %190 = vmatprep.subr.mxu0 0.0
    %191 = vmatpush1.msra.mxu0 0.0
    %192 = vmatprep.subr.mxu0 0.0
    %193 = vmatpush1.msra.mxu0 0.0
    %194 = vmatprep.subr.mxu0 0.0
    %195 = vmatpush1.msra.mxu0 0.0
    %196 = vmatprep.subr.mxu0 0.0
    %197 = vmatpush1.msra.mxu0 0.0
    %198 = vmatprep.subr.mxu0 0.0
    %199 = vmatpush1.msra.mxu0 0.0
    %200 = vmatprep.subr.mxu0 0.0
    %201 = vmatpush1.msra.mxu0 0.0
    %202 = vmatprep.subr.mxu0 0.0
    %203 = vmatpush1.msra.mxu0 0.0
    %204 = vmatprep.subr.mxu0 0.0
    %205 = vmatpush1.msra.mxu0 0.0
    %206 = vmatprep.subr.mxu0 0.0
    %207 = vmatpush1.msra.mxu0 0.0
    %208 = vmatprep.subr.mxu0 0.0
    %209 = vmatpush1.msra.mxu0 0.0
    %210 = vmatprep.subr.mxu0 0.0
    %211 = vmatpush1.msra.mxu0 %v170
    %212 = vmatprep.subr.mxu0 0.0
    %213 = vmatpush1.msra.mxu0 %v165
    %214 = vmatprep.subr.mxu0 0.0
    %215 = vmatpush2.msra.mxu0 0.0
    %216 = vmatprep.subr.mxu0 0.0
    %217 = vmatpush2.msra.mxu0 0.0
    %218 = vmatprep.subr.mxu0 0.0
    %219 = vmatpush2.msra.mxu0 0.0
    %220 = vmatprep.subr.mxu0 0.0
    %221 = vmatpush2.msra.mxu0 0.0
    %222 = vmatprep.subr.mxu0 0.0
    %223 = vmatpush2.msra.mxu0 0.0
    %224 = vmatprep.subr.mxu0 0.0
    %225 = vmatpush2.msra.mxu0 0.0
    %226 = vmatprep.subr.mxu0 0.0
    %227 = vmatpush2.msra.mxu0 0.0
    %228 = vmatprep.subr.mxu0 0.0
    %229 = vmatpush2.msra.mxu0 0.0
    %230 = vmatprep.subr.mxu0 0.0
    %231 = vmatpush2.msra.mxu0 0.0
    %232 = vmatprep.subr.mxu0 0.0
    %233 = vmatpush2.msra.mxu0 0.0
    %234 = vmatprep.subr.mxu0 0.0
    %235 = vmatpush2.msra.mxu0 0.0
    %236 = vmatprep.subr.mxu0 0.0
    %237 = vmatpush2.msra.mxu0 0.0
    %238 = vmatprep.subr.mxu0 0.0
    %239 = vmatpush2.msra.mxu0 0.0
    %240 = vmatprep.subr.mxu0 0.0
    %241 = vmatpush2.msra.mxu0 0.0
    %242 = vmatprep.subr.mxu0 0.0
    %243 = vmatpush2.msra.mxu0 0.0
    %244 = vmatprep.subr.mxu0 0.0
    %245 = vmatpush2.msra.mxu0 0.0
    %246 = vmatprep.mubr.f32.mxu0 0.0
    %247 = vmatmul.mubr.f32.gmra.mxu0 %v177
    %v248 = vpop.f32.mrf.mxu0
    %v249 = vadd.f32 0.0, %v248
    %v250 = vpop.f32.mrf.mxu0
    %251 = vmatprep.mubr.f32.mxu0 0.0
    %252 = vmatmul.mubr.f32.gmra.mxu0 %v180
    %v253 = vpop.f32.mrf.mxu0
    %v254 = vadd.f32 0.0, %v253
    %v255 = vpop.f32.mrf.mxu0
    %256 = vdwg.mxu0
    %v257 = vsub.f32 %v77, %v249
    %v258 = vsub.f32 %v78, %v254
    %v259 = vmul.f32 %v257, %v257
    %v260 = vmul.f32 %v258, %v258
    %v261 = vsel %vm91, %v259, 0.0
    %v262 = vsel %vm91, %v260, 0.0
    %v263 = vadd.f32 %v261, %v262
    %264 = vadd.xlane.f32.xlu0 %v263
    %v265 = vpop.xlane.xlu0 %264
    %v266 = vrot.slane %v265, 4
    %v267 = vadd.f32 %v265, %v266
    %v268 = vrot.slane %v267, 2
    %v269 = vadd.f32 %v267, %v268
    %v270 = vrot.slane %v269, 1
    %v271 = vadd.f32 %v269, %v270
    %s272 = vtos %v271
    %v273 = vstv %s272
    %vm274 = vcmask 0
    %275 = vst.msk [vmem:[#allocation10] sm:$0x1] %vm274, %v273
    // Predicated region
    $region34: #{tpu_custom_call.1} parent=1 // pred_check
      _
    $region35: #{tpu_custom_call.1} parent=1 // pred_check_branch
      %277 = sbr.rel (0) target = $region37
    $region36: #{tpu_custom_call.1} parent=1 // pred_region
      %s279 = ssub.s32 16, 16
      %280 = vsyncadd [#allocation4], %s279
      %s282 = sshll.u32 [#allocation10], 4
      %s283 = int_to_ptr.vmem [resolvable:$true] %s282
      %285 = dma.vmem_to_hbm [thread:$0]  %s283, 16, %s4, [#allocation4]
    $region37: #{tpu_custom_call.1} parent=1 // pred_fallthru
      _
    // Predicated region
    $region38: #{tpu_custom_call.1} parent=1 // pred_check
      _
    $region39: #{tpu_custom_call.1} parent=1 // pred_check_branch
      %287 = sbr.rel (0) target = $region41
    $region40: #{tpu_custom_call.1} parent=1 // pred_region
      %288 = dma.done [#allocation4], 16
    $region41: #{tpu_custom_call.1} parent=1 // pred_fallthru
      _
    %289 = vsyncpa [#allocation3], 1
    %290 = vsyncpa [#allocation6], 1
    %291 = vsyncpa [#allocation9], 1
    %292 = vsyncpa [#allocation4], 1

// kernel: tpu_custom_call.1
$region0: #{tpu_custom_call.1}
  #allocation0 [shape = 'u32[]', space=smem, size = 0x4, offset = 0x4, fixed_abs, tag = 'smem constant byte address 0x4 - core index']
  #allocation1 [shape = 'u32[144,128]{1,0:T(1,128)}', space=vmem, size = 0x12000, scoped, tag = 'internal scratch']
  %s0 = inlined_call_operand.hbm [shape: f32[16,96], index: 0, kind: input, shape index: {}]
  %s1 = inlined_call_operand.hbm [shape: f32[16,96], index: 1, kind: input, shape index: {}]
  %s2 = inlined_call_operand.hbm [shape: f32[16,16], index: 2, kind: input, shape index: {}]
  %s3 = inlined_call_operand.hbm [shape: f32[96,96], index: 3, kind: input, shape index: {}]
  %s4 = inlined_call_operand.hbm [shape: f32[1,1,1], index: 4, kind: output, shape index: {}]
  %s5 = sld [smem:[#allocation0]]
  $region42: #{tpu_custom_call.1} parent=0
    _
  %s7 = ssub.s32 1, %s5
  %s8 = scalar_select 0, %s7, %s5
  $region1: #{tpu_custom_call.1} parent=0
    #allocation2 [shape = 'u8[8192]{0}', space=vmem, size = 0x2000, scoped, tag = 'input window, operand 0, single buffered']
    #allocation3 [shape = 's32[1]{0}', space=sflag, size = 0x4, scoped, tag = 'scoped memory for tpu_custom_call.1']
    #allocation4 [shape = 's32[1]{0}', space=sflag, size = 0x4, scoped, tag = 'scoped memory for tpu_custom_call.1']
    #allocation5 [shape = 'u8[8192]{0}', space=vmem, size = 0x2000, scoped, tag = 'input window, operand 1, single buffered']
    #allocation6 [shape = 's32[1]{0}', space=sflag, size = 0x4, scoped, tag = 'scoped memory for tpu_custom_call.1']
    #allocation7 [shape = 'u8[8192]{0}', space=vmem, size = 0x2000, scoped, tag = 'input window, operand 2, single buffered']
    #allocation8 [shape = 'u8[49152]{0}', space=vmem, size = 0xc000, scoped, tag = 'input window, operand 3, single buffered']
    #allocation9 [shape = 's32[1]{0}', space=sflag, size = 0x4, scoped, tag = 'scoped memory for tpu_custom_call.1']
    #allocation10 [shape = 'u8[512]{0}', space=vmem, size = 0x400, scoped, tag = 'output window, operand 0, single buffered']
    %9 = vsyncpa [#allocation3], 0
    %10 = vsyncpa [#allocation6], 0
    %11 = vsyncpa [#allocation9], 0
    %12 = vsyncpa [#allocation4], 0
    // Predicated region
    $region2: #{tpu_custom_call.1} parent=1 // pred_check
      _
    $region3: #{tpu_custom_call.1} parent=1 // pred_check_branch
      %14 = sbr.rel (0) target = $region5
    $region4: #{tpu_custom_call.1} parent=1 // pred_region
      %s16 = ssub.s32 256, 256
      %17 = vsyncadd [#allocation3], %s16
      %s18 = sshll.u32 [#allocation2], 4
      %s19 = int_to_ptr.vmem [resolvable:$true] %s18
      %24 = dma.hbm_to_vmem [thread:$0]  %s0, 256, %s19, [#allocation3], 128, 128, 8
    $region5: #{tpu_custom_call.1} parent=1 // pred_fallthru
      _
    // Predicated region
    $region6: #{tpu_custom_call.1} parent=1 // pred_check
      _
    $region7: #{tpu_custom_call.1} parent=1 // pred_check_branch
      %26 = sbr.rel (0) target = $region9
    $region8: #{tpu_custom_call.1} parent=1 // pred_region
      %s28 = ssub.s32 256, 256
      %29 = vsyncadd [#allocation6], %s28
      %s30 = sshll.u32 [#allocation5], 4
      %s31 = int_to_ptr.vmem [resolvable:$true] %s30
      %36 = dma.hbm_to_vmem [thread:$0]  %s1, 256, %s31, [#allocation6], 128, 128, 8
    $region9: #{tpu_custom_call.1} parent=1 // pred_fallthru
      _
    // Predicated region
    $region10: #{tpu_custom_call.1} parent=1 // pred_check
      _
    $region11: #{tpu_custom_call.1} parent=1 // pred_check_branch
      %38 = sbr.rel (0) target = $region13
    $region12: #{tpu_custom_call.1} parent=1 // pred_region
      %s40 = ssub.s32 256, 256
      %41 = vsyncadd [#allocation6], %s40
      %s42 = sshll.u32 [#allocation7], 4
      %s43 = int_to_ptr.vmem [resolvable:$true] %s42
      %48 = dma.hbm_to_vmem [thread:$0]  %s2, 256, %s43, [#allocation6], 128, 128, 8
    $region13: #{tpu_custom_call.1} parent=1 // pred_fallthru
      _
    // Predicated region
    $region14: #{tpu_custom_call.1} parent=1 // pred_check
      _
    $region15: #{tpu_custom_call.1} parent=1 // pred_check_branch
      %50 = sbr.rel (0) target = $region17
    $region16: #{tpu_custom_call.1} parent=1 // pred_region
      %s52 = ssub.s32 1536, 1536
      %53 = vsyncadd [#allocation9], %s52
      %s54 = sshll.u32 [#allocation8], 4
      %s55 = int_to_ptr.vmem [resolvable:$true] %s54
      %60 = dma.hbm_to_vmem [thread:$0]  %s3, 1536, %s55, [#allocation9], 128, 128, 8
    $region17: #{tpu_custom_call.1} parent=1 // pred_fallthru
      _
    // Predicated region
    $region18: #{tpu_custom_call.1} parent=1 // pred_check
      _
    $region19: #{tpu_custom_call.1} parent=1 // pred_check_branch
      %62 = sbr.rel (0) target = $region21
    $region20: #{tpu_custom_call.1} parent=1 // pred_region
      %63 = dma.done [#allocation3], 256
    $region21: #{tpu_custom_call.1} parent=1 // pred_fallthru
      _
    // Predicated region
    $region22: #{tpu_custom_call.1} parent=1 // pred_check
      _
    $region23: #{tpu_custom_call.1} parent=1 // pred_check_branch
      %65 = sbr.rel (0) target = $region25
    $region24: #{tpu_custom_call.1} parent=1 // pred_region
      %66 = dma.done [#allocation6], 256
    $region25: #{tpu_custom_call.1} parent=1 // pred_fallthru
      _
    // Predicated region
    $region26: #{tpu_custom_call.1} parent=1 // pred_check
      _
    $region27: #{tpu_custom_call.1} parent=1 // pred_check_branch
      %68 = sbr.rel (0) target = $region29
    $region28: #{tpu_custom_call.1} parent=1 // pred_region
      %69 = dma.done [#allocation6], 256
    $region29: #{tpu_custom_call.1} parent=1 // pred_fallthru
      _
    // Predicated region
    $region30: #{tpu_custom_call.1} parent=1 // pred_check
      _
    $region31: #{tpu_custom_call.1} parent=1 // pred_check_branch
      %71 = sbr.rel (0) target = $region33
    $region32: #{tpu_custom_call.1} parent=1 // pred_region
      %72 = dma.done [#allocation9], 1536
    $region33: #{tpu_custom_call.1} parent=1 // pred_fallthru
      _
    %v73 = vld [vmem:[#allocation2] sm:$0xff]
    %v74 = vld [vmem:[#allocation2 + $0x8] sm:$0xff]
    %v75 = vld [vmem:[#allocation5] sm:$0xff]
    %v76 = vld [vmem:[#allocation5 + $0x8] sm:$0xff]
    %v77 = vsub.f32 %v73, %v75
    %v78 = vsub.f32 %v74, %v76
    %v79 = vld [vmem:[#allocation8] sm:$0xff]
    %v80 = vld [vmem:[#allocation8 + $0x8] sm:$0xff]
    %v81 = vld [vmem:[#allocation8 + $0x10] sm:$0xff]
    %v82 = vld [vmem:[#allocation8 + $0x18] sm:$0xff]
    %v83 = vld [vmem:[#allocation8 + $0x20] sm:$0xff]
    %v84 = vld [vmem:[#allocation8 + $0x28] sm:$0xff]
    %v85 = vld [vmem:[#allocation8 + $0x30] sm:$0xff]
    %v86 = vld [vmem:[#allocation8 + $0x38] sm:$0xff]
    %v87 = vld [vmem:[#allocation8 + $0x40] sm:$0xff]
    %v88 = vld [vmem:[#allocation8 + $0x48] sm:$0xff]
    %v89 = vld [vmem:[#allocation8 + $0x50] sm:$0xff]
    %v90 = vld [vmem:[#allocation8 + $0x58] sm:$0xff]
    %vm91 = vcmask 785408
    %v93 = vsel %vm91, %v77, 0
    %v96 = vsel %vm91, %v78, 0
    %98 = vmatprep.subr.mxu0 0.0
    %99 = vmatpush1.msra.mxu0 0.0
    %100 = vmatprep.subr.mxu0 0.0
    %101 = vmatpush1.msra.mxu0 0.0
    %102 = vmatprep.subr.mxu0 0.0
    %103 = vmatpush1.msra.mxu0 0.0
    %104 = vmatprep.subr.mxu0 0.0
    %105 = vmatpush1.msra.mxu0 0.0
    %106 = vmatprep.subr.mxu0 0.0
    %107 = vmatpush1.msra.mxu0 %v90
    %108 = vmatprep.subr.mxu0 0.0
    %109 = vmatpush1.msra.mxu0 %v89
    %110 = vmatprep.subr.mxu0 0.0
    %111 = vmatpush1.msra.mxu0 %v88
    %112 = vmatprep.subr.mxu0 0.0
    %113 = vmatpush1.msra.mxu0 %v87
    %114 = vmatprep.subr.mxu0 0.0
    %115 = vmatpush1.msra.mxu0 %v86
    %116 = vmatprep.subr.mxu0 0.0
    %117 = vmatpush1.msra.mxu0 %v85
    %118 = vmatprep.subr.mxu0 0.0
    %119 = vmatpush1.msra.mxu0 %v84
    %120 = vmatprep.subr.mxu0 0.0
    %121 = vmatpush1.msra.mxu0 %v83
    %122 = vmatprep.subr.mxu0 0.0
    %123 = vmatpush1.msra.mxu0 %v82
    %124 = vmatprep.subr.mxu0 0.0
    %125 = vmatpush1.msra.mxu0 %v81
    %126 = vmatprep.subr.mxu0 0.0
    %127 = vmatpush1.msra.mxu0 %v80
    %128 = vmatprep.subr.mxu0 0.0
    %129 = vmatpush1.msra.mxu0 %v79
    %130 = vmatprep.subr.mxu0 0.0
    %131 = vmatpush2.msra.mxu0 0.0
    %132 = vmatprep.subr.mxu0 0.0
    %133 = vmatpush2.msra.mxu0 0.0
    %134 = vmatprep.subr.mxu0 0.0
    %135 = vmatpush2.msra.mxu0 0.0
    %136 = vmatprep.subr.mxu0 0.0
    %137 = vmatpush2.msra.mxu0 0.0
    %138 = vmatprep.subr.mxu0 0.0
    %139 = vmatpush2.msra.mxu0 0.0
    %140 = vmatprep.subr.mxu0 0.0
    %141 = vmatpush2.msra.mxu0 0.0
    %142 = vmatprep.subr.mxu0 0.0
    %143 = vmatpush2.msra.mxu0 0.0
    %144 = vmatprep.subr.mxu0 0.0
    %145 = vmatpush2.msra.mxu0 0.0
    %146 = vmatprep.subr.mxu0 0.0
    %147 = vmatpush2.msra.mxu0 0.0
    %148 = vmatprep.subr.mxu0 0.0
    %149 = vmatpush2.msra.mxu0 0.0
    %150 = vmatprep.subr.mxu0 0.0
    %151 = vmatpush2.msra.mxu0 0.0
    %152 = vmatprep.subr.mxu0 0.0
    %153 = vmatpush2.msra.mxu0 0.0
    %154 = vmatprep.subr.mxu0 0.0
    %155 = vmatpush2.msra.mxu0 0.0
    %156 = vmatprep.subr.mxu0 0.0
    %157 = vmatpush2.msra.mxu0 0.0
    %158 = vmatprep.subr.mxu0 0.0
    %159 = vmatpush2.msra.mxu0 0.0
    %160 = vmatprep.subr.mxu0 0.0
    %161 = vmatpush2.msra.mxu0 0.0
    %162 = vmatprep.mubr.f32.mxu0 0.0
    %163 = vmatmul.mubr.f32.gmra.mxu0 %v93
    %v164 = vpop.f32.mrf.mxu0
    %v165 = vadd.f32 0.0, %v164
    %v166 = vpop.f32.mrf.mxu0
    %167 = vmatprep.mubr.f32.mxu0 0.0
    %168 = vmatmul.mubr.f32.gmra.mxu0 %v96
    %v169 = vpop.f32.mrf.mxu0
    %v170 = vadd.f32 0.0, %v169
    %v171 = vpop.f32.mrf.mxu0
    %172 = vdwg.mxu0
    %v173 = vld [vmem:[#allocation7] sm:$0xff]
    %v174 = vld [vmem:[#allocation7 + $0x8] sm:$0xff]
    %vm175 = vcmask 130048
    %v177 = vsel %vm175, %v173, 0
    %v180 = vsel %vm175, %v174, 0
    %182 = vmatprep.subr.mxu0 0.0
    %183 = vmatpush1.msra.mxu0 0.0
    %184 = vmatprep.subr.mxu0 0.0
    %185 = vmatpush1.msra.mxu0 0.0
    %186 = vmatprep.subr.mxu0 0.0
    %187 = vmatpush1.msra.mxu0 0.0
    %188 = vmatprep.subr.mxu0 0.0
    %189 = vmatpush1.msra.mxu0 0.0
    %190 = vmatprep.subr.mxu0 0.0
    %191 = vmatpush1.msra.mxu0 0.0
    %192 = vmatprep.subr.mxu0 0.0
    %193 = vmatpush1.msra.mxu0 0.0
    %194 = vmatprep.subr.mxu0 0.0
    %195 = vmatpush1.msra.mxu0 0.0
    %196 = vmatprep.subr.mxu0 0.0
    %197 = vmatpush1.msra.mxu0 0.0
    %198 = vmatprep.subr.mxu0 0.0
    %199 = vmatpush1.msra.mxu0 0.0
    %200 = vmatprep.subr.mxu0 0.0
    %201 = vmatpush1.msra.mxu0 0.0
    %202 = vmatprep.subr.mxu0 0.0
    %203 = vmatpush1.msra.mxu0 0.0
    %204 = vmatprep.subr.mxu0 0.0
    %205 = vmatpush1.msra.mxu0 0.0
    %206 = vmatprep.subr.mxu0 0.0
    %207 = vmatpush1.msra.mxu0 0.0
    %208 = vmatprep.subr.mxu0 0.0
    %209 = vmatpush1.msra.mxu0 0.0
    %210 = vmatprep.subr.mxu0 0.0
    %211 = vmatpush1.msra.mxu0 %v170
    %212 = vmatprep.subr.mxu0 0.0
    %213 = vmatpush1.msra.mxu0 %v165
    %214 = vmatprep.subr.mxu0 0.0
    %215 = vmatpush2.msra.mxu0 0.0
    %216 = vmatprep.subr.mxu0 0.0
    %217 = vmatpush2.msra.mxu0 0.0
    %218 = vmatprep.subr.mxu0 0.0
    %219 = vmatpush2.msra.mxu0 0.0
    %220 = vmatprep.subr.mxu0 0.0
    %221 = vmatpush2.msra.mxu0 0.0
    %222 = vmatprep.subr.mxu0 0.0
    %223 = vmatpush2.msra.mxu0 0.0
    %224 = vmatprep.subr.mxu0 0.0
    %225 = vmatpush2.msra.mxu0 0.0
    %226 = vmatprep.subr.mxu0 0.0
    %227 = vmatpush2.msra.mxu0 0.0
    %228 = vmatprep.subr.mxu0 0.0
    %229 = vmatpush2.msra.mxu0 0.0
    %230 = vmatprep.subr.mxu0 0.0
    %231 = vmatpush2.msra.mxu0 0.0
    %232 = vmatprep.subr.mxu0 0.0
    %233 = vmatpush2.msra.mxu0 0.0
    %234 = vmatprep.subr.mxu0 0.0
    %235 = vmatpush2.msra.mxu0 0.0
    %236 = vmatprep.subr.mxu0 0.0
    %237 = vmatpush2.msra.mxu0 0.0
    %238 = vmatprep.subr.mxu0 0.0
    %239 = vmatpush2.msra.mxu0 0.0
    %240 = vmatprep.subr.mxu0 0.0
    %241 = vmatpush2.msra.mxu0 0.0
    %242 = vmatprep.subr.mxu0 0.0
    %243 = vmatpush2.msra.mxu0 0.0
    %244 = vmatprep.subr.mxu0 0.0
    %245 = vmatpush2.msra.mxu0 0.0
    %246 = vmatprep.mubr.f32.mxu0 0.0
    %247 = vmatmul.mubr.f32.gmra.mxu0 %v177
    %v248 = vpop.f32.mrf.mxu0
    %v249 = vadd.f32 0.0, %v248
    %v250 = vpop.f32.mrf.mxu0
    %251 = vmatprep.mubr.f32.mxu0 0.0
    %252 = vmatmul.mubr.f32.gmra.mxu0 %v180
    %v253 = vpop.f32.mrf.mxu0
    %v254 = vadd.f32 0.0, %v253
    %v255 = vpop.f32.mrf.mxu0
    %256 = vdwg.mxu0
    %v257 = vsub.f32 %v77, %v249
    %v258 = vsub.f32 %v78, %v254
    %v259 = vmul.f32 %v257, %v257
    %v260 = vmul.f32 %v258, %v258
    %v261 = vsel %vm91, %v259, 0.0
    %v262 = vsel %vm91, %v260, 0.0
    %v263 = vadd.f32 %v261, %v262
    %264 = vadd.xlane.f32.xlu0 %v263
    %v265 = vpop.xlane.xlu0 %264
    %v266 = vrot.slane %v265, 4
    %v267 = vadd.f32 %v265, %v266
    %v268 = vrot.slane %v267, 2
    %v269 = vadd.f32 %v267, %v268
    %v270 = vrot.slane %v269, 1
    %v271 = vadd.f32 %v269, %v270
    %s272 = vtos %v271
    %v273 = vstv %s272
    %vm274 = vcmask 0
    %275 = vst.msk [vmem:[#allocation10] sm:$0x1] %vm274, %v273
    // Predicated region
    $region34: #{tpu_custom_call.1} parent=1 // pred_check
      _
    $region35: #{tpu_custom_call.1} parent=1 // pred_check_branch
      %277 = sbr.rel (0) target = $region37
    $region36: #{tpu_custom_call.1} parent=1 // pred_region
      %s279 = ssub.s32 16, 16
      %280 = vsyncadd [#allocation4], %s279
      %s282 = sshll.u32 [#allocation10], 4
      %s283 = int_to_ptr.vmem [resolvable:$true] %s282
      %285 = dma.vmem_to_hbm [thread:$0]  %s283, 16, %s4, [#allocation4]
    $region37: #{tpu_custom_call.1} parent=1 // pred_fallthru
      _
    // Predicated region
    $region38: #{tpu_custom_call.1} parent=1 // pred_check
      _
    $region39: #{tpu_custom_call.1} parent=1 // pred_check_branch
      %287 = sbr.rel (0) target = $region41
    $region40: #{tpu_custom_call.1} parent=1 // pred_region
      %288 = dma.done [#allocation4], 16
    $region41: #{tpu_custom_call.1} parent=1 // pred_fallthru
      _
    %289 = vsyncpa [#allocation3], 1
    %290 = vsyncpa [#allocation6], 1
    %291 = vsyncpa [#allocation9], 1
    %292 = vsyncpa [#allocation4], 1

</llo_original>
